<compile_context>
chip_gen: v5e
topology: v5e:2x2
jax: 0.10.0
libtpu: 0.0.40
codegen_flags: <defaults>
</compile_context>

<pallas_src>
import functools

import jax
import jax.numpy as jnp
from jax.experimental import pallas as pl
from jax.experimental.pallas import tpu as pltpu

_FEAT = 16                # per-input feature width (y and M are each (B, 16))
_PACK = 128 // _FEAT      # 8 batch rows packed per 128-lane row
_HID = 32                 # hidden width of l0 / l1


def _global_disc_kernel(y_ref, m_ref, w0y_ref, w0m_ref, b0_ref,
                        w1_ref, b1_ref, w2_ref, b2_ref, out_ref):
    # y_ref / m_ref: (TR, 128) packed rows; lane c = (batch slot c//16, feat c%16).
    # l0 with the torch.cat folded into two dense K=128 matmuls against the
    # block-diagonal weight halves; MXU accumulation is f32.
    h = jnp.dot(y_ref[...], w0y_ref[...], preferred_element_type=jnp.float32)
    h = h + jnp.dot(m_ref[...], w0m_ref[...], preferred_element_type=jnp.float32)
    h = jnp.maximum(h + b0_ref[...], 0.0)                      # (TR, 256)

    # l1
    h = jnp.dot(h, w1_ref[...], preferred_element_type=jnp.float32)
    h = jnp.maximum(h + b1_ref[...], 0.0)                      # (TR, 256)

    # l2 -> packed (TR, 8) output; b2 is a scalar read from SMEM.
    out = jnp.dot(h, w2_ref[...], preferred_element_type=jnp.float32)
    out_ref[...] = (out + b2_ref[0, 0]).astype(out_ref.dtype)


def global_discriminator_forward(y, M, packed_params, *, block_b=8192,
                                 core_parallel=False):
    """y: (B, 16), M: (B, 16) -> (B, 1) f32.

    packed_params: output of pack_params().  block_b: batch rows per grid step
    (sweep 2048..16384).  core_parallel=True shards the batch grid across the
    two TensorCores of a v7x chip.
    """
    B, F = y.shape
    assert F == _FEAT and M.shape == (B, F)
    w0y_big, w0m_big, b0t, w1_big, b1t, w2_big, b2 = packed_params

    # Only pad to the 8-row packing granularity (<= 7 rows).  No tile-level pad:
    # the ragged tail grid block is clipped/masked by Pallas.
    R = pl.cdiv(B, _PACK)
    Bp = R * _PACK
    if Bp != B:
        y = jnp.pad(y, ((0, Bp - B), (0, 0)))
        M = jnp.pad(M, ((0, Bp - B), (0, 0)))
    yp = y.reshape(R, _PACK * F)       # free row-major view -> (R, 128) lane-dense
    mp = M.reshape(R, _PACK * F)

    # Packed-row tile: multiple of 8 sublanes, or the whole array when small.
    max_tr = max(8, (block_b // _PACK) // 8 * 8)
    tr = R if R <= max_tr else max_tr
    grid = (pl.cdiv(R, tr),)

    def resident(a):
        # Whole-array VMEM block with a constant index map -> stays resident.
        return pl.BlockSpec(a.shape, lambda i: (0, 0))

    flops = int(R) * (2 * 2 * 128 * 256 + 2 * 256 * 256 + 2 * 256 * _PACK)
    param_bytes = int(sum(int(p.size) * p.dtype.itemsize for p in packed_params))
    bytes_accessed = int(R) * (2 * 128 * yp.dtype.itemsize + _PACK * 4) + param_bytes
    cost = pl.CostEstimate(flops=flops, transcendentals=0,
                           bytes_accessed=bytes_accessed)

    semantics = (pltpu.CORE_PARALLEL,) if core_parallel else ("parallel",)

    out = pl.pallas_call(
        _global_disc_kernel,
        out_shape=jax.ShapeDtypeStruct((R, _PACK), jnp.float32),
        grid=grid,
        in_specs=[
            pl.BlockSpec((tr, _PACK * F), lambda i: (i, 0)),    # packed y block
            pl.BlockSpec((tr, _PACK * F), lambda i: (i, 0)),    # packed M block
            resident(w0y_big),                                  # (128, 256)
            resident(w0m_big),                                  # (128, 256)
            resident(b0t),                                      # (1, 256)
            resident(w1_big),                                   # (256, 256)
            resident(b1t),                                      # (1, 256)
            resident(w2_big),                                   # (256, 8)
            pl.BlockSpec(memory_space=pltpu.MemorySpace.SMEM),  # b2 scalar
        ],
        out_specs=pl.BlockSpec((tr, _PACK), lambda i: (i, 0)),
        compiler_params=pltpu.CompilerParams(dimension_semantics=semantics),
        cost_estimate=cost,
    )(yp, mp, w0y_big, w0m_big, b0t, w1_big, b1t, w2_big, b2)

    # Packed (R, 8) slab -> (B, 1) column (row-major flat order == batch order).
    return out.reshape(Bp, 1)[:B]


def init_params(key):
    """PyTorch-style nn.Linear init (U[-1/sqrt(in), 1/sqrt(in)]), logical layout."""
    def linear(k, fan_in, fan_out):
        kw, kb = jax.random.split(k)
        bound = 1.0 / jnp.sqrt(float(fan_in))
        w = jax.random.uniform(kw, (fan_out, fan_in), jnp.float32, -bound, bound)
        b = jax.random.uniform(kb, (fan_out,), jnp.float32, -bound, bound)
        return w, b

    k0, k1, k2 = jax.random.split(key, 3)
    w0, b0 = linear(k0, 32, 32)   # l0: Linear(32, 32)
    w1, b1 = linear(k1, 32, 32)   # l1: Linear(32, 32)
    w2, b2 = linear(k2, 32, 1)    # l2: see TODO(synk) re: declared Linear(512, 1)
    return (w0, b0, w1, b1, w2, b2)


def _block_diag_repeat(a, n):
    r, c = a.shape
    out = jnp.zeros((n * r, n * c), a.dtype)
    for s in range(n):
        out = out.at[s * r:(s + 1) * r, s * c:(s + 1) * c].set(a)
    return out


def pack_params(params):
    """Kernel-layout parameters for the batch-packed lane-dense kernel.

    Weights become block-diagonal (one block per packed batch slot) so each
    layer is one dense matmul over the packed 128/256-lane axis; W0 is split
    into its y-columns and M-columns so the torch.cat never has to happen.
    Biases b0/b1 are pre-tiled to (1, 256); b2 is a (1, 1) SMEM scalar.
    """
    w0, b0, w1, b1, w2, b2 = params
    w0y, w0m = w0[:, :_FEAT], w0[:, _FEAT:]
    w0y_big = _block_diag_repeat(w0y.T, _PACK)        # (128, 256)
    w0m_big = _block_diag_repeat(w0m.T, _PACK)        # (128, 256)
    w1_big = _block_diag_repeat(w1.T, _PACK)          # (256, 256)
    w2_big = _block_diag_repeat(w2.T, _PACK)          # (256, 8)
    b0t = jnp.tile(b0.reshape(1, _HID), (1, _PACK))   # (1, 256)
    b1t = jnp.tile(b1.reshape(1, _HID), (1, _PACK))   # (1, 256)
    return (w0y_big, w0m_big, b0t, w1_big, b1t, w2_big, b2.reshape(1, 1))


def reference_forward(y, M, params):
    """Pure-JAX reference of the same math, for a correctness check."""
    w0, b0, w1, b1, w2, b2 = params
    h = jnp.concatenate([y, M], axis=1)               # (B, 32)
    h = jnp.maximum(h @ w0.T + b0, 0.0)
    h = jnp.maximum(h @ w1.T + b1, 0.0)
    return h @ w2.T + b2                               # (B, 1)


if __name__ == "__main__":
    key = jax.random.PRNGKey(0)
    k_y, k_m, k_p, k_y2, k_m2 = jax.random.split(key, 5)

    params = init_params(k_p)
    packed = pack_params(params)
    fwd = jax.jit(functools.partial(global_discriminator_forward, block_b=8192))

    # Small shapes consistent with the module's forward (16 + 16 features).
    B = 8
    y = jax.random.normal(k_y, (B, _FEAT), jnp.float32)   # graph-level embedding half
    M = jax.random.normal(k_m, (B, _FEAT), jnp.float32)   # "encoded" node-feature half
    out = jax.block_until_ready(fwd(y, M, packed))
    ref = reference_forward(y, M, params)
    assert out.shape == (B, 1)
    assert jnp.allclose(out, ref, atol=1e-4, rtol=1e-4), "mismatch vs reference (B=8)"

    # Second check: multiple grid steps, ragged packing (300 % 8 != 0) and a
    # partial (masked) tail grid block.
    B2 = 300
    y2 = jax.random.normal(k_y2, (B2, _FEAT), jnp.float32)
    M2 = jax.random.normal(k_m2, (B2, _FEAT), jnp.float32)
    out2 = jax.block_until_ready(
        global_discriminator_forward(y2, M2, packed, block_b=128))
    ref2 = reference_forward(y2, M2, params)
    assert out2.shape == (B2, 1)
    assert jnp.allclose(out2, ref2, atol=1e-4, rtol=1e-4), "mismatch vs reference (B=300)"

    print("KERNEL_OK")
</pallas_src>

<mosaic_0001>
module attributes {stable_mosaic.version = 11 : i64} {
  func.func @_global_disc_kernel(%arg0: i32, %arg1: memref<1x128xf32, #tpu.memory_space<vmem>>, %arg2: memref<1x128xf32, #tpu.memory_space<vmem>>, %arg3: memref<128x256xf32, #tpu.memory_space<vmem>>, %arg4: memref<128x256xf32, #tpu.memory_space<vmem>>, %arg5: memref<1x256xf32, #tpu.memory_space<vmem>>, %arg6: memref<256x256xf32, #tpu.memory_space<vmem>>, %arg7: memref<1x256xf32, #tpu.memory_space<vmem>>, %arg8: memref<256x8xf32, #tpu.memory_space<vmem>>, %arg9: memref<1x1xf32, #tpu.memory_space<smem>>, %arg10: memref<1x8xf32, #tpu.memory_space<vmem>>) attributes {dimension_semantics = [#tpu.dimension_semantics<parallel>], iteration_bounds = array<i64: 1>, scalar_prefetch = 0 : i64, scratch_operands = 0 : i64, tpu.core_type = #tpu.core_type<tc>, window_params = [{transform_indices = @transform_0, window_bounds = array<i64: 1, 128>}, {transform_indices = @transform_1, window_bounds = array<i64: 1, 128>}, {pipeline_mode = #tpu.pipeline_mode<synchronous>, transform_indices = @transform_2, window_bounds = array<i64: 128, 256>}, {pipeline_mode = #tpu.pipeline_mode<synchronous>, transform_indices = @transform_3, window_bounds = array<i64: 128, 256>}, {pipeline_mode = #tpu.pipeline_mode<synchronous>, transform_indices = @transform_4, window_bounds = array<i64: 1, 256>}, {pipeline_mode = #tpu.pipeline_mode<synchronous>, transform_indices = @transform_5, window_bounds = array<i64: 256, 256>}, {pipeline_mode = #tpu.pipeline_mode<synchronous>, transform_indices = @transform_6, window_bounds = array<i64: 1, 256>}, {pipeline_mode = #tpu.pipeline_mode<synchronous>, transform_indices = @transform_7, window_bounds = array<i64: 256, 8>}, {transform_indices = @transform_8, window_bounds = array<i64: 1, 1>}, {transform_indices = @transform_9, window_bounds = array<i64: 1, 8>}]} {
    %c0 = arith.constant 0 : index
    %c0_0 = arith.constant 0 : index
    %0 = vector.load %arg1[%c0, %c0_0] : memref<1x128xf32, #tpu.memory_space<vmem>>, vector<1x128xf32>
    %c0_1 = arith.constant 0 : index
    %c0_2 = arith.constant 0 : index
    %1 = vector.load %arg3[%c0_1, %c0_2] : memref<128x256xf32, #tpu.memory_space<vmem>>, vector<128x256xf32>
    %cst = arith.constant dense<0.000000e+00> : vector<1x256xf32>
    %2 = tpu.matmul %0, %1, %cst {dimension_numbers = #tpu.dot_dimension_numbers<[1], [0], [0], [1], [0, 0, 1, 1], [], []>} : vector<1x128xf32>, vector<128x256xf32>, vector<1x256xf32> -> vector<1x256xf32>
    %c0_3 = arith.constant 0 : index
    %c0_4 = arith.constant 0 : index
    %3 = vector.load %arg2[%c0_3, %c0_4] : memref<1x128xf32, #tpu.memory_space<vmem>>, vector<1x128xf32>
    %c0_5 = arith.constant 0 : index
    %c0_6 = arith.constant 0 : index
    %4 = vector.load %arg4[%c0_5, %c0_6] : memref<128x256xf32, #tpu.memory_space<vmem>>, vector<128x256xf32>
    %cst_7 = arith.constant dense<0.000000e+00> : vector<1x256xf32>
    %5 = tpu.matmul %3, %4, %cst_7 {dimension_numbers = #tpu.dot_dimension_numbers<[1], [0], [0], [1], [0, 0, 1, 1], [], []>} : vector<1x128xf32>, vector<128x256xf32>, vector<1x256xf32> -> vector<1x256xf32>
    %6 = arith.addf %2, %5 : vector<1x256xf32>
    %c0_8 = arith.constant 0 : index
    %c0_9 = arith.constant 0 : index
    %7 = vector.load %arg5[%c0_8, %c0_9] : memref<1x256xf32, #tpu.memory_space<vmem>>, vector<1x256xf32>
    %8 = arith.addf %6, %7 : vector<1x256xf32>
    %cst_10 = arith.constant 0.000000e+00 : f32
    %9 = vector.broadcast %cst_10 : f32 to vector<1x256xf32>
    %10 = arith.maximumf %8, %9 : vector<1x256xf32>
    %c0_11 = arith.constant 0 : index
    %c0_12 = arith.constant 0 : index
    %11 = vector.load %arg6[%c0_11, %c0_12] : memref<256x256xf32, #tpu.memory_space<vmem>>, vector<256x256xf32>
    %cst_13 = arith.constant dense<0.000000e+00> : vector<1x256xf32>
    %12 = tpu.matmul %10, %11, %cst_13 {dimension_numbers = #tpu.dot_dimension_numbers<[1], [0], [0], [1], [0, 0, 1, 1], [], []>} : vector<1x256xf32>, vector<256x256xf32>, vector<1x256xf32> -> vector<1x256xf32>
    %c0_14 = arith.constant 0 : index
    %c0_15 = arith.constant 0 : index
    %13 = vector.load %arg7[%c0_14, %c0_15] : memref<1x256xf32, #tpu.memory_space<vmem>>, vector<1x256xf32>
    %14 = arith.addf %12, %13 : vector<1x256xf32>
    %cst_16 = arith.constant 0.000000e+00 : f32
    %15 = vector.broadcast %cst_16 : f32 to vector<1x256xf32>
    %16 = arith.maximumf %14, %15 : vector<1x256xf32>
    %c0_17 = arith.constant 0 : index
    %c0_18 = arith.constant 0 : index
    %17 = vector.load %arg8[%c0_17, %c0_18] : memref<256x8xf32, #tpu.memory_space<vmem>>, vector<256x8xf32>
    %cst_19 = arith.constant dense<0.000000e+00> : vector<1x8xf32>
    %18 = tpu.matmul %16, %17, %cst_19 {dimension_numbers = #tpu.dot_dimension_numbers<[1], [0], [0], [1], [0, 0, 1, 1], [], []>} : vector<1x256xf32>, vector<256x8xf32>, vector<1x8xf32> -> vector<1x8xf32>
    %c0_20 = arith.constant 0 : index
    %c0_21 = arith.constant 0 : index
    %19 = memref.load %arg9[%c0_20, %c0_21] : memref<1x1xf32, #tpu.memory_space<smem>>
    %20 = vector.broadcast %19 : f32 to vector<1x8xf32>
    %21 = arith.addf %18, %20 : vector<1x8xf32>
    %c0_22 = arith.constant 0 : index
    %c0_23 = arith.constant 0 : index
    %22 = vector.load %arg10[%c0_22, %c0_23] : memref<1x8xf32, #tpu.memory_space<vmem>>, vector<1x8xf32>
    tpu.vector_store %arg10[%c0_22, %c0_23], %21 {strides = array<i32>} : memref<1x8xf32, #tpu.memory_space<vmem>>, vector<1x8xf32>,
    return
  }
  func.func @transform_0(%arg0: i32) -> (i32, i32) {
    %c0_i32 = arith.constant 0 : i32
    %c0_i32_0 = arith.constant 0 : i32
    return %arg0, %c0_i32 : i32, i32
  }
  func.func @transform_1(%arg0: i32) -> (i32, i32) {
    %c0_i32 = arith.constant 0 : i32
    %c0_i32_0 = arith.constant 0 : i32
    return %arg0, %c0_i32 : i32, i32
  }
  func.func @transform_2(%arg0: i32) -> (i32, i32) {
    %c0_i32 = arith.constant 0 : i32
    %c0_i32_0 = arith.constant 0 : i32
    %c0_i32_1 = arith.constant 0 : i32
    return %c0_i32, %c0_i32_0 : i32, i32
  }
  func.func @transform_3(%arg0: i32) -> (i32, i32) {
    %c0_i32 = arith.constant 0 : i32
    %c0_i32_0 = arith.constant 0 : i32
    %c0_i32_1 = arith.constant 0 : i32
    return %c0_i32, %c0_i32_0 : i32, i32
  }
  func.func @transform_4(%arg0: i32) -> (i32, i32) {
    %c0_i32 = arith.constant 0 : i32
    %c0_i32_0 = arith.constant 0 : i32
    %c0_i32_1 = arith.constant 0 : i32
    return %c0_i32, %c0_i32_0 : i32, i32
  }
  func.func @transform_5(%arg0: i32) -> (i32, i32) {
    %c0_i32 = arith.constant 0 : i32
    %c0_i32_0 = arith.constant 0 : i32
    %c0_i32_1 = arith.constant 0 : i32
    return %c0_i32, %c0_i32_0 : i32, i32
  }
  func.func @transform_6(%arg0: i32) -> (i32, i32) {
    %c0_i32 = arith.constant 0 : i32
    %c0_i32_0 = arith.constant 0 : i32
    %c0_i32_1 = arith.constant 0 : i32
    return %c0_i32, %c0_i32_0 : i32, i32
  }
  func.func @transform_7(%arg0: i32) -> (i32, i32) {
    %c0_i32 = arith.constant 0 : i32
    %c0_i32_0 = arith.constant 0 : i32
    %c0_i32_1 = arith.constant 0 : i32
    return %c0_i32, %c0_i32_0 : i32, i32
  }
  func.func @transform_8(%arg0: i32) -> (i32, i32) {
    %c0_i32 = arith.constant 0 : i32
    %c0_i32_0 = arith.constant 0 : i32
    %c0_i32_1 = arith.constant 0 : i32
    return %c0_i32, %c0_i32_0 : i32, i32
  }
  func.func @transform_9(%arg0: i32) -> (i32, i32) {
    %c0_i32 = arith.constant 0 : i32
    %c0_i32_0 = arith.constant 0 : i32
    return %arg0, %c0_i32 : i32, i32
  }
}

</mosaic_0001>

<llo_original>
// kernel: global_discriminator_forward.1
$region0: #{global_discriminator_forward.1}
  #allocation0 [shape = 'u32[]', space=smem, size = 0x4, offset = 0x4, fixed_abs, tag = 'smem constant byte address 0x4 - core index']
  #allocation1 [shape = 'u32[72,128]{1,0:T(1,128)}', space=vmem, size = 0x9000, scoped, tag = 'internal scratch']
  #allocation2 [shape = 'f32[1,1]{1,0:T(1,128)S(6)}', space=smem, size = 0x200, scoped, tag = 'scoped memory for global_discriminator_forward.1']
  %s0 = inlined_call_operand.vmem [shape: f32[1,128], index: 0, kind: input, shape index: {}]
  %s1 = inlined_call_operand.vmem [shape: f32[1,128], index: 1, kind: input, shape index: {}]
  %s2 = inlined_call_operand.vmem [shape: f32[128,256], index: 2, kind: input, shape index: {}]
  %s3 = inlined_call_operand.hbm [shape: f32[128,256], index: 3, kind: input, shape index: {}]
  %s4 = inlined_call_operand.vmem [shape: f32[1,256], index: 4, kind: input, shape index: {}]
  %s5 = inlined_call_operand.hbm [shape: f32[256,256], index: 5, kind: input, shape index: {}]
  %s6 = inlined_call_operand.vmem [shape: f32[1,256], index: 6, kind: input, shape index: {}]
  %s7 = inlined_call_operand.vmem [shape: f32[256,8], index: 7, kind: input, shape index: {}]
  %s8 = inlined_call_operand.<no memory space> [shape: f32[1,1], index: 8, kind: input, shape index: {}]
  %s9 = inlined_call_operand.hbm [shape: f32[1,8], index: 9, kind: output, shape index: {}]
  %s10 = sld [smem:[#allocation0]]
  $region54: #{global_discriminator_forward.1} parent=0
    _
  %s12 = ssub.s32 1, %s10
  %s13 = scalar_select 0, %s12, %s10
  %14 = sst [smem:[#allocation2]] %s8
  $region1: #{global_discriminator_forward.1} parent=0
    #allocation3 [shape = 'u8[131072]{0}', space=vmem, size = 0x20000, scoped, tag = 'input window, operand 3, single buffered']
    #allocation4 [shape = 's32[1]{0}', space=sflag, size = 0x4, scoped, tag = 'scoped memory for global_discriminator_forward.1']
    #allocation5 [shape = 's32[1]{0}', space=sflag, size = 0x4, scoped, tag = 'scoped memory for global_discriminator_forward.1']
    #allocation6 [shape = 'u8[262144]{0}', space=vmem, size = 0x40000, scoped, tag = 'input window, operand 5, single buffered']
    #allocation7 [shape = 's32[1]{0}', space=sflag, size = 0x4, scoped, tag = 'scoped memory for global_discriminator_forward.1']
    #allocation8 [shape = 'u8[512]{0}', space=vmem, size = 0x400, scoped, tag = 'output window, operand 0, single buffered']
    %15 = vsyncpa [#allocation4], 0
    %16 = vsyncpa [#allocation7], 0
    %17 = vsyncpa [#allocation5], 0
    // Predicated region
    $region2: #{global_discriminator_forward.1} parent=1 // pred_check
      _
    $region3: #{global_discriminator_forward.1} parent=1 // pred_check_branch
      %19 = sbr.rel (0) target = $region5
    $region4: #{global_discriminator_forward.1} parent=1 // pred_region
      _
    $region5: #{global_discriminator_forward.1} parent=1 // pred_fallthru
      _
    // Predicated region
    $region6: #{global_discriminator_forward.1} parent=1 // pred_check
      _
    $region7: #{global_discriminator_forward.1} parent=1 // pred_check_branch
      %21 = sbr.rel (0) target = $region9
    $region8: #{global_discriminator_forward.1} parent=1 // pred_region
      _
    $region9: #{global_discriminator_forward.1} parent=1 // pred_fallthru
      _
    // Predicated region
    $region10: #{global_discriminator_forward.1} parent=1 // pred_check
      _
    $region11: #{global_discriminator_forward.1} parent=1 // pred_check_branch
      %23 = sbr.rel (0) target = $region13
    $region12: #{global_discriminator_forward.1} parent=1 // pred_region
      _
    $region13: #{global_discriminator_forward.1} parent=1 // pred_fallthru
      _
    // Predicated region
    $region14: #{global_discriminator_forward.1} parent=1 // pred_check
      _
    $region15: #{global_discriminator_forward.1} parent=1 // pred_check_branch
      %25 = sbr.rel (0) target = $region17
    $region16: #{global_discriminator_forward.1} parent=1 // pred_region
      %27 = vsyncadd [#allocation4], 0
      %s28 = sshll.u32 %s3, 4
      %s29 = int_to_ptr.hbm [resolvable:$true] %s28
      %s30 = sshll.u32 [#allocation3], 4
      %s31 = int_to_ptr.vmem [resolvable:$true] %s30
      %36 = dma.hbm_to_vmem [thread:$0]  %s29, 4096, %s31, [#allocation4], 256, 256, 16
    $region17: #{global_discriminator_forward.1} parent=1 // pred_fallthru
      _
    // Predicated region
    $region18: #{global_discriminator_forward.1} parent=1 // pred_check
      _
    $region19: #{global_discriminator_forward.1} parent=1 // pred_check_branch
      %38 = sbr.rel (0) target = $region21
    $region20: #{global_discriminator_forward.1} parent=1 // pred_region
      _
    $region21: #{global_discriminator_forward.1} parent=1 // pred_fallthru
      _
    // Predicated region
    $region22: #{global_discriminator_forward.1} parent=1 // pred_check
      _
    $region23: #{global_discriminator_forward.1} parent=1 // pred_check_branch
      %40 = sbr.rel (0) target = $region25
    $region24: #{global_discriminator_forward.1} parent=1 // pred_region
      %42 = vsyncadd [#allocation7], 0
      %s43 = sshll.u32 %s5, 4
      %s44 = int_to_ptr.hbm [resolvable:$true] %s43
      %s45 = sshll.u32 [#allocation6], 4
      %s46 = int_to_ptr.vmem [resolvable:$true] %s45
      %51 = dma.hbm_to_vmem [thread:$0]  %s44, 8192, %s46, [#allocation7], 256, 256, 16
    $region25: #{global_discriminator_forward.1} parent=1 // pred_fallthru
      _
    // Predicated region
    $region26: #{global_discriminator_forward.1} parent=1 // pred_check
      _
    $region27: #{global_discriminator_forward.1} parent=1 // pred_check_branch
      %53 = sbr.rel (0) target = $region29
    $region28: #{global_discriminator_forward.1} parent=1 // pred_region
      _
    $region29: #{global_discriminator_forward.1} parent=1 // pred_fallthru
      _
    // Predicated region
    $region30: #{global_discriminator_forward.1} parent=1 // pred_check
      _
    $region31: #{global_discriminator_forward.1} parent=1 // pred_check_branch
      %55 = sbr.rel (0) target = $region33
    $region32: #{global_discriminator_forward.1} parent=1 // pred_region
      _
    $region33: #{global_discriminator_forward.1} parent=1 // pred_fallthru
      _
    // Predicated region
    $region34: #{global_discriminator_forward.1} parent=1 // pred_check
      _
    $region35: #{global_discriminator_forward.1} parent=1 // pred_check_branch
      %57 = sbr.rel (0) target = $region37
    $region36: #{global_discriminator_forward.1} parent=1 // pred_region
      _
    $region37: #{global_discriminator_forward.1} parent=1 // pred_fallthru
      _
    // Predicated region
    $region38: #{global_discriminator_forward.1} parent=1 // pred_check
      _
    $region39: #{global_discriminator_forward.1} parent=1 // pred_check_branch
      %59 = sbr.rel (0) target = $region41
    $region40: #{global_discriminator_forward.1} parent=1 // pred_region
      %61 = dma.done [#allocation4], 4096
    $region41: #{global_discriminator_forward.1} parent=1 // pred_fallthru
      _
    // Predicated region
    $region42: #{global_discriminator_forward.1} parent=1 // pred_check
      _
    $region43: #{global_discriminator_forward.1} parent=1 // pred_check_branch
      %63 = sbr.rel (0) target = $region45
    $region44: #{global_discriminator_forward.1} parent=1 // pred_region
      %65 = dma.done [#allocation7], 8192
    $region45: #{global_discriminator_forward.1} parent=1 // pred_fallthru
      _
    %v66 = vld [vmem:[%s0] sm:$0x1]
    %v67 = vld [vmem:[%s2] sm:$0xff]
    %v68 = vld [vmem:[%s2 + $0x8] sm:$0xff]
    %v69 = vld [vmem:[%s2 + $0x10] sm:$0xff]
    %v70 = vld [vmem:[%s2 + $0x18] sm:$0xff]
    %v71 = vld [vmem:[%s2 + $0x20] sm:$0xff]
    %v72 = vld [vmem:[%s2 + $0x28] sm:$0xff]
    %v73 = vld [vmem:[%s2 + $0x30] sm:$0xff]
    %v74 = vld [vmem:[%s2 + $0x38] sm:$0xff]
    %v75 = vld [vmem:[%s2 + $0x40] sm:$0xff]
    %v76 = vld [vmem:[%s2 + $0x48] sm:$0xff]
    %v77 = vld [vmem:[%s2 + $0x50] sm:$0xff]
    %v78 = vld [vmem:[%s2 + $0x58] sm:$0xff]
    %v79 = vld [vmem:[%s2 + $0x60] sm:$0xff]
    %v80 = vld [vmem:[%s2 + $0x68] sm:$0xff]
    %v81 = vld [vmem:[%s2 + $0x70] sm:$0xff]
    %v82 = vld [vmem:[%s2 + $0x78] sm:$0xff]
    %v83 = vld [vmem:[%s2 + $0x80] sm:$0xff]
    %v84 = vld [vmem:[%s2 + $0x88] sm:$0xff]
    %v85 = vld [vmem:[%s2 + $0x90] sm:$0xff]
    %v86 = vld [vmem:[%s2 + $0x98] sm:$0xff]
    %v87 = vld [vmem:[%s2 + $0xa0] sm:$0xff]
    %v88 = vld [vmem:[%s2 + $0xa8] sm:$0xff]
    %v89 = vld [vmem:[%s2 + $0xb0] sm:$0xff]
    %v90 = vld [vmem:[%s2 + $0xb8] sm:$0xff]
    %v91 = vld [vmem:[%s2 + $0xc0] sm:$0xff]
    %v92 = vld [vmem:[%s2 + $0xc8] sm:$0xff]
    %v93 = vld [vmem:[%s2 + $0xd0] sm:$0xff]
    %v94 = vld [vmem:[%s2 + $0xd8] sm:$0xff]
    %v95 = vld [vmem:[%s2 + $0xe0] sm:$0xff]
    %v96 = vld [vmem:[%s2 + $0xe8] sm:$0xff]
    %v97 = vld [vmem:[%s2 + $0xf0] sm:$0xff]
    %v98 = vld [vmem:[%s2 + $0xf8] sm:$0xff]
    %v99 = vld [vmem:[%s1] sm:$0x1]
    %v100 = vld [vmem:[#allocation3] sm:$0xff]
    %v101 = vld [vmem:[#allocation3 + $0x8] sm:$0xff]
    %v102 = vld [vmem:[#allocation3 + $0x10] sm:$0xff]
    %v103 = vld [vmem:[#allocation3 + $0x18] sm:$0xff]
    %v104 = vld [vmem:[#allocation3 + $0x20] sm:$0xff]
    %v105 = vld [vmem:[#allocation3 + $0x28] sm:$0xff]
    %v106 = vld [vmem:[#allocation3 + $0x30] sm:$0xff]
    %v107 = vld [vmem:[#allocation3 + $0x38] sm:$0xff]
    %v108 = vld [vmem:[#allocation3 + $0x40] sm:$0xff]
    %v109 = vld [vmem:[#allocation3 + $0x48] sm:$0xff]
    %v110 = vld [vmem:[#allocation3 + $0x50] sm:$0xff]
    %v111 = vld [vmem:[#allocation3 + $0x58] sm:$0xff]
    %v112 = vld [vmem:[#allocation3 + $0x60] sm:$0xff]
    %v113 = vld [vmem:[#allocation3 + $0x68] sm:$0xff]
    %v114 = vld [vmem:[#allocation3 + $0x70] sm:$0xff]
    %v115 = vld [vmem:[#allocation3 + $0x78] sm:$0xff]
    %v116 = vld [vmem:[#allocation3 + $0x80] sm:$0xff]
    %v117 = vld [vmem:[#allocation3 + $0x88] sm:$0xff]
    %v118 = vld [vmem:[#allocation3 + $0x90] sm:$0xff]
    %v119 = vld [vmem:[#allocation3 + $0x98] sm:$0xff]
    %v120 = vld [vmem:[#allocation3 + $0xa0] sm:$0xff]
    %v121 = vld [vmem:[#allocation3 + $0xa8] sm:$0xff]
    %v122 = vld [vmem:[#allocation3 + $0xb0] sm:$0xff]
    %v123 = vld [vmem:[#allocation3 + $0xb8] sm:$0xff]
    %v124 = vld [vmem:[#allocation3 + $0xc0] sm:$0xff]
    %v125 = vld [vmem:[#allocation3 + $0xc8] sm:$0xff]
    %v126 = vld [vmem:[#allocation3 + $0xd0] sm:$0xff]
    %v127 = vld [vmem:[#allocation3 + $0xd8] sm:$0xff]
    %v128 = vld [vmem:[#allocation3 + $0xe0] sm:$0xff]
    %v129 = vld [vmem:[#allocation3 + $0xe8] sm:$0xff]
    %v130 = vld [vmem:[#allocation3 + $0xf0] sm:$0xff]
    %v131 = vld [vmem:[#allocation3 + $0xf8] sm:$0xff]
    %132 = vmatpush.msra.mxu0 %v130
    %133 = vmatpush.msra.mxu0 %v128
    %134 = vmatpush.msra.mxu0 %v126
    %135 = vmatpush.msra.mxu0 %v124
    %136 = vmatpush.msra.mxu0 %v122
    %137 = vmatpush.msra.mxu0 %v120
    %138 = vmatpush.msra.mxu0 %v118
    %139 = vmatpush.msra.mxu0 %v116
    %140 = vmatpush.msra.mxu0 %v114
    %141 = vmatpush.msra.mxu0 %v112
    %142 = vmatpush.msra.mxu0 %v110
    %143 = vmatpush.msra.mxu0 %v108
    %144 = vmatpush.msra.mxu0 %v106
    %145 = vmatpush.msra.mxu0 %v104
    %146 = vmatpush.msra.mxu0 %v102
    %147 = vmatpush.msra.mxu0 %v100
    %148 = vmatmul.f32.gmra.mxu0 %v99
    %v149 = vpop.f32.mrf.mxu0
    %v150 = vadd.f32 0.0, %v149
    %151 = vdwg.mxu0
    %152 = vmatpush.msra.mxu0 %v131
    %153 = vmatpush.msra.mxu0 %v129
    %154 = vmatpush.msra.mxu0 %v127
    %155 = vmatpush.msra.mxu0 %v125
    %156 = vmatpush.msra.mxu0 %v123
    %157 = vmatpush.msra.mxu0 %v121
    %158 = vmatpush.msra.mxu0 %v119
    %159 = vmatpush.msra.mxu0 %v117
    %160 = vmatpush.msra.mxu0 %v115
    %161 = vmatpush.msra.mxu0 %v113
    %162 = vmatpush.msra.mxu0 %v111
    %163 = vmatpush.msra.mxu0 %v109
    %164 = vmatpush.msra.mxu0 %v107
    %165 = vmatpush.msra.mxu0 %v105
    %166 = vmatpush.msra.mxu0 %v103
    %167 = vmatpush.msra.mxu0 %v101
    %168 = vmatmul.f32.gmra.mxu0 %v99
    %v169 = vpop.f32.mrf.mxu0
    %v170 = vadd.f32 0.0, %v169
    %171 = vdwg.mxu0
    %172 = vmatpush.msra.mxu0 %v97
    %173 = vmatpush.msra.mxu0 %v95
    %174 = vmatpush.msra.mxu0 %v93
    %175 = vmatpush.msra.mxu0 %v91
    %176 = vmatpush.msra.mxu0 %v89
    %177 = vmatpush.msra.mxu0 %v87
    %178 = vmatpush.msra.mxu0 %v85
    %179 = vmatpush.msra.mxu0 %v83
    %180 = vmatpush.msra.mxu0 %v81
    %181 = vmatpush.msra.mxu0 %v79
    %182 = vmatpush.msra.mxu0 %v77
    %183 = vmatpush.msra.mxu0 %v75
    %184 = vmatpush.msra.mxu0 %v73
    %185 = vmatpush.msra.mxu0 %v71
    %186 = vmatpush.msra.mxu0 %v69
    %187 = vmatpush.msra.mxu0 %v67
    %188 = vmatmul.f32.gmra.mxu0 %v66
    %v189 = vpop.f32.mrf.mxu0
    %v190 = vadd.f32 %v150, %v189
    %191 = vdwg.mxu0
    %192 = vmatpush.msra.mxu0 %v98
    %193 = vmatpush.msra.mxu0 %v96
    %194 = vmatpush.msra.mxu0 %v94
    %195 = vmatpush.msra.mxu0 %v92
    %196 = vmatpush.msra.mxu0 %v90
    %197 = vmatpush.msra.mxu0 %v88
    %198 = vmatpush.msra.mxu0 %v86
    %199 = vmatpush.msra.mxu0 %v84
    %200 = vmatpush.msra.mxu0 %v82
    %201 = vmatpush.msra.mxu0 %v80
    %202 = vmatpush.msra.mxu0 %v78
    %203 = vmatpush.msra.mxu0 %v76
    %204 = vmatpush.msra.mxu0 %v74
    %205 = vmatpush.msra.mxu0 %v72
    %206 = vmatpush.msra.mxu0 %v70
    %207 = vmatpush.msra.mxu0 %v68
    %208 = vmatmul.f32.gmra.mxu0 %v66
    %v209 = vpop.f32.mrf.mxu0
    %v210 = vadd.f32 %v170, %v209
    %211 = vdwg.mxu0
    %v212 = vld [vmem:[%s4] sm:$0x3]
    %v214 = vperm.slane %v212, 0
    %v215 = vperm.slane %v212, 1
    %v218 = vadd.f32 %v190, %v214
    %v219 = vadd.f32 %v210, %v215
    %v220 = vmax.f32 %v218, 0.0
    %v221 = vmax.f32 %v219, 0.0
    %v222 = vld [vmem:[#allocation6] sm:$0xff]
    %v223 = vld [vmem:[#allocation6 + $0x8] sm:$0xff]
    %v224 = vld [vmem:[#allocation6 + $0x10] sm:$0xff]
    %v225 = vld [vmem:[#allocation6 + $0x18] sm:$0xff]
    %v226 = vld [vmem:[#allocation6 + $0x20] sm:$0xff]
    %v227 = vld [vmem:[#allocation6 + $0x28] sm:$0xff]
    %v228 = vld [vmem:[#allocation6 + $0x30] sm:$0xff]
    %v229 = vld [vmem:[#allocation6 + $0x38] sm:$0xff]
    %v230 = vld [vmem:[#allocation6 + $0x40] sm:$0xff]
    %v231 = vld [vmem:[#allocation6 + $0x48] sm:$0xff]
    %v232 = vld [vmem:[#allocation6 + $0x50] sm:$0xff]
    %v233 = vld [vmem:[#allocation6 + $0x58] sm:$0xff]
    %v234 = vld [vmem:[#allocation6 + $0x60] sm:$0xff]
    %v235 = vld [vmem:[#allocation6 + $0x68] sm:$0xff]
    %v236 = vld [vmem:[#allocation6 + $0x70] sm:$0xff]
    %v237 = vld [vmem:[#allocation6 + $0x78] sm:$0xff]
    %v238 = vld [vmem:[#allocation6 + $0x80] sm:$0xff]
    %v239 = vld [vmem:[#allocation6 + $0x88] sm:$0xff]
    %v240 = vld [vmem:[#allocation6 + $0x90] sm:$0xff]
    %v241 = vld [vmem:[#allocation6 + $0x98] sm:$0xff]
    %v242 = vld [vmem:[#allocation6 + $0xa0] sm:$0xff]
    %v243 = vld [vmem:[#allocation6 + $0xa8] sm:$0xff]
    %v244 = vld [vmem:[#allocation6 + $0xb0] sm:$0xff]
    %v245 = vld [vmem:[#allocation6 + $0xb8] sm:$0xff]
    %v246 = vld [vmem:[#allocation6 + $0xc0] sm:$0xff]
    %v247 = vld [vmem:[#allocation6 + $0xc8] sm:$0xff]
    %v248 = vld [vmem:[#allocation6 + $0xd0] sm:$0xff]
    %v249 = vld [vmem:[#allocation6 + $0xd8] sm:$0xff]
    %v250 = vld [vmem:[#allocation6 + $0xe0] sm:$0xff]
    %v251 = vld [vmem:[#allocation6 + $0xe8] sm:$0xff]
    %v252 = vld [vmem:[#allocation6 + $0xf0] sm:$0xff]
    %v253 = vld [vmem:[#allocation6 + $0xf8] sm:$0xff]
    %v254 = vld [vmem:[#allocation6 + $0x100] sm:$0xff]
    %v255 = vld [vmem:[#allocation6 + $0x108] sm:$0xff]
    %v256 = vld [vmem:[#allocation6 + $0x110] sm:$0xff]
    %v257 = vld [vmem:[#allocation6 + $0x118] sm:$0xff]
    %v258 = vld [vmem:[#allocation6 + $0x120] sm:$0xff]
    %v259 = vld [vmem:[#allocation6 + $0x128] sm:$0xff]
    %v260 = vld [vmem:[#allocation6 + $0x130] sm:$0xff]
    %v261 = vld [vmem:[#allocation6 + $0x138] sm:$0xff]
    %v262 = vld [vmem:[#allocation6 + $0x140] sm:$0xff]
    %v263 = vld [vmem:[#allocation6 + $0x148] sm:$0xff]
    %v264 = vld [vmem:[#allocation6 + $0x150] sm:$0xff]
    %v265 = vld [vmem:[#allocation6 + $0x158] sm:$0xff]
    %v266 = vld [vmem:[#allocation6 + $0x160] sm:$0xff]
    %v267 = vld [vmem:[#allocation6 + $0x168] sm:$0xff]
    %v268 = vld [vmem:[#allocation6 + $0x170] sm:$0xff]
    %v269 = vld [vmem:[#allocation6 + $0x178] sm:$0xff]
    %v270 = vld [vmem:[#allocation6 + $0x180] sm:$0xff]
    %v271 = vld [vmem:[#allocation6 + $0x188] sm:$0xff]
    %v272 = vld [vmem:[#allocation6 + $0x190] sm:$0xff]
    %v273 = vld [vmem:[#allocation6 + $0x198] sm:$0xff]
    %v274 = vld [vmem:[#allocation6 + $0x1a0] sm:$0xff]
    %v275 = vld [vmem:[#allocation6 + $0x1a8] sm:$0xff]
    %v276 = vld [vmem:[#allocation6 + $0x1b0] sm:$0xff]
    %v277 = vld [vmem:[#allocation6 + $0x1b8] sm:$0xff]
    %v278 = vld [vmem:[#allocation6 + $0x1c0] sm:$0xff]
    %v279 = vld [vmem:[#allocation6 + $0x1c8] sm:$0xff]
    %v280 = vld [vmem:[#allocation6 + $0x1d0] sm:$0xff]
    %v281 = vld [vmem:[#allocation6 + $0x1d8] sm:$0xff]
    %v282 = vld [vmem:[#allocation6 + $0x1e0] sm:$0xff]
    %v283 = vld [vmem:[#allocation6 + $0x1e8] sm:$0xff]
    %v284 = vld [vmem:[#allocation6 + $0x1f0] sm:$0xff]
    %v285 = vld [vmem:[#allocation6 + $0x1f8] sm:$0xff]
    %v286 = vld [vmem:[%s6] sm:$0x3]
    %v288 = vperm.slane %v286, 0
    %v289 = vperm.slane %v286, 1
    %292 = vmatpush.msra.mxu0 %v252
    %293 = vmatpush.msra.mxu0 %v250
    %294 = vmatpush.msra.mxu0 %v248
    %295 = vmatpush.msra.mxu0 %v246
    %296 = vmatpush.msra.mxu0 %v244
    %297 = vmatpush.msra.mxu0 %v242
    %298 = vmatpush.msra.mxu0 %v240
    %299 = vmatpush.msra.mxu0 %v238
    %300 = vmatpush.msra.mxu0 %v236
    %301 = vmatpush.msra.mxu0 %v234
    %302 = vmatpush.msra.mxu0 %v232
    %303 = vmatpush.msra.mxu0 %v230
    %304 = vmatpush.msra.mxu0 %v228
    %305 = vmatpush.msra.mxu0 %v226
    %306 = vmatpush.msra.mxu0 %v224
    %307 = vmatpush.msra.mxu0 %v222
    %308 = vmatmul.f32.gmra.mxu0 %v220
    %v309 = vpop.f32.mrf.mxu0
    %v310 = vadd.f32 %v288, %v309
    %311 = vdwg.mxu0
    %312 = vmatpush.msra.mxu0 %v284
    %313 = vmatpush.msra.mxu0 %v282
    %314 = vmatpush.msra.mxu0 %v280
    %315 = vmatpush.msra.mxu0 %v278
    %316 = vmatpush.msra.mxu0 %v276
    %317 = vmatpush.msra.mxu0 %v274
    %318 = vmatpush.msra.mxu0 %v272
    %319 = vmatpush.msra.mxu0 %v270
    %320 = vmatpush.msra.mxu0 %v268
    %321 = vmatpush.msra.mxu0 %v266
    %322 = vmatpush.msra.mxu0 %v264
    %323 = vmatpush.msra.mxu0 %v262
    %324 = vmatpush.msra.mxu0 %v260
    %325 = vmatpush.msra.mxu0 %v258
    %326 = vmatpush.msra.mxu0 %v256
    %327 = vmatpush.msra.mxu0 %v254
    %328 = vmatmul.f32.gmra.mxu0 %v221
    %v329 = vpop.f32.mrf.mxu0
    %v330 = vadd.f32 %v310, %v329
    %331 = vdwg.mxu0
    %332 = vmatpush.msra.mxu0 %v253
    %333 = vmatpush.msra.mxu0 %v251
    %334 = vmatpush.msra.mxu0 %v249
    %335 = vmatpush.msra.mxu0 %v247
    %336 = vmatpush.msra.mxu0 %v245
    %337 = vmatpush.msra.mxu0 %v243
    %338 = vmatpush.msra.mxu0 %v241
    %339 = vmatpush.msra.mxu0 %v239
    %340 = vmatpush.msra.mxu0 %v237
    %341 = vmatpush.msra.mxu0 %v235
    %342 = vmatpush.msra.mxu0 %v233
    %343 = vmatpush.msra.mxu0 %v231
    %344 = vmatpush.msra.mxu0 %v229
    %345 = vmatpush.msra.mxu0 %v227
    %346 = vmatpush.msra.mxu0 %v225
    %347 = vmatpush.msra.mxu0 %v223
    %348 = vmatmul.f32.gmra.mxu0 %v220
    %v349 = vpop.f32.mrf.mxu0
    %v350 = vadd.f32 %v289, %v349
    %351 = vdwg.mxu0
    %352 = vmatpush.msra.mxu0 %v285
    %353 = vmatpush.msra.mxu0 %v283
    %354 = vmatpush.msra.mxu0 %v281
    %355 = vmatpush.msra.mxu0 %v279
    %356 = vmatpush.msra.mxu0 %v277
    %357 = vmatpush.msra.mxu0 %v275
    %358 = vmatpush.msra.mxu0 %v273
    %359 = vmatpush.msra.mxu0 %v271
    %360 = vmatpush.msra.mxu0 %v269
    %361 = vmatpush.msra.mxu0 %v267
    %362 = vmatpush.msra.mxu0 %v265
    %363 = vmatpush.msra.mxu0 %v263
    %364 = vmatpush.msra.mxu0 %v261
    %365 = vmatpush.msra.mxu0 %v259
    %366 = vmatpush.msra.mxu0 %v257
    %367 = vmatpush.msra.mxu0 %v255
    %368 = vmatmul.f32.gmra.mxu0 %v221
    %v369 = vpop.f32.mrf.mxu0
    %v370 = vadd.f32 %v350, %v369
    %371 = vdwg.mxu0
    %v372 = vmax.f32 %v330, 0.0
    %v373 = vmax.f32 %v370, 0.0
    %v374 = vld [vmem:[%s7] sm:$0xff]
    %v375 = vld [vmem:[%s7 + $0x8] sm:$0xff]
    %v376 = vld [vmem:[%s7 + $0x10] sm:$0xff]
    %v377 = vld [vmem:[%s7 + $0x18] sm:$0xff]
    %v378 = vld [vmem:[%s7 + $0x20] sm:$0xff]
    %v379 = vld [vmem:[%s7 + $0x28] sm:$0xff]
    %v380 = vld [vmem:[%s7 + $0x30] sm:$0xff]
    %v381 = vld [vmem:[%s7 + $0x38] sm:$0xff]
    %v382 = vld [vmem:[%s7 + $0x40] sm:$0xff]
    %v383 = vld [vmem:[%s7 + $0x48] sm:$0xff]
    %v384 = vld [vmem:[%s7 + $0x50] sm:$0xff]
    %v385 = vld [vmem:[%s7 + $0x58] sm:$0xff]
    %v386 = vld [vmem:[%s7 + $0x60] sm:$0xff]
    %v387 = vld [vmem:[%s7 + $0x68] sm:$0xff]
    %v388 = vld [vmem:[%s7 + $0x70] sm:$0xff]
    %v389 = vld [vmem:[%s7 + $0x78] sm:$0xff]
    %v390 = vld [vmem:[%s7 + $0x80] sm:$0xff]
    %v391 = vld [vmem:[%s7 + $0x88] sm:$0xff]
    %v392 = vld [vmem:[%s7 + $0x90] sm:$0xff]
    %v393 = vld [vmem:[%s7 + $0x98] sm:$0xff]
    %v394 = vld [vmem:[%s7 + $0xa0] sm:$0xff]
    %v395 = vld [vmem:[%s7 + $0xa8] sm:$0xff]
    %v396 = vld [vmem:[%s7 + $0xb0] sm:$0xff]
    %v397 = vld [vmem:[%s7 + $0xb8] sm:$0xff]
    %v398 = vld [vmem:[%s7 + $0xc0] sm:$0xff]
    %v399 = vld [vmem:[%s7 + $0xc8] sm:$0xff]
    %v400 = vld [vmem:[%s7 + $0xd0] sm:$0xff]
    %v401 = vld [vmem:[%s7 + $0xd8] sm:$0xff]
    %v402 = vld [vmem:[%s7 + $0xe0] sm:$0xff]
    %v403 = vld [vmem:[%s7 + $0xe8] sm:$0xff]
    %v404 = vld [vmem:[%s7 + $0xf0] sm:$0xff]
    %v405 = vld [vmem:[%s7 + $0xf8] sm:$0xff]
    %s406 = sld [smem:[#allocation2]]
    %v407 = vstv %s406
    %408 = vmatpush.msra.mxu0 %v389
    %409 = vmatpush.msra.mxu0 %v388
    %410 = vmatpush.msra.mxu0 %v387
    %411 = vmatpush.msra.mxu0 %v386
    %412 = vmatpush.msra.mxu0 %v385
    %413 = vmatpush.msra.mxu0 %v384
    %414 = vmatpush.msra.mxu0 %v383
    %415 = vmatpush.msra.mxu0 %v382
    %416 = vmatpush.msra.mxu0 %v381
    %417 = vmatpush.msra.mxu0 %v380
    %418 = vmatpush.msra.mxu0 %v379
    %419 = vmatpush.msra.mxu0 %v378
    %420 = vmatpush.msra.mxu0 %v377
    %421 = vmatpush.msra.mxu0 %v376
    %422 = vmatpush.msra.mxu0 %v375
    %423 = vmatpush.msra.mxu0 %v374
    %424 = vmatmul.f32.gmra.mxu0 %v372
    %v425 = vpop.f32.mrf.mxu0
    %v426 = vadd.f32 %v407, %v425
    %427 = vdwg.mxu0
    %428 = vmatpush.msra.mxu0 %v405
    %429 = vmatpush.msra.mxu0 %v404
    %430 = vmatpush.msra.mxu0 %v403
    %431 = vmatpush.msra.mxu0 %v402
    %432 = vmatpush.msra.mxu0 %v401
    %433 = vmatpush.msra.mxu0 %v400
    %434 = vmatpush.msra.mxu0 %v399
    %435 = vmatpush.msra.mxu0 %v398
    %436 = vmatpush.msra.mxu0 %v397
    %437 = vmatpush.msra.mxu0 %v396
    %438 = vmatpush.msra.mxu0 %v395
    %439 = vmatpush.msra.mxu0 %v394
    %440 = vmatpush.msra.mxu0 %v393
    %441 = vmatpush.msra.mxu0 %v392
    %442 = vmatpush.msra.mxu0 %v391
    %443 = vmatpush.msra.mxu0 %v390
    %444 = vmatmul.f32.gmra.mxu0 %v373
    %v445 = vpop.f32.mrf.mxu0
    %v446 = vadd.f32 %v426, %v445
    %447 = vdwg.mxu0
    %vm448 = vcmask 57344
    %449 = vst.msk [vmem:[#allocation8] sm:$0x1] %vm448, %v446
    // Predicated region
    $region46: #{global_discriminator_forward.1} parent=1 // pred_check
      _
    $region47: #{global_discriminator_forward.1} parent=1 // pred_check_branch
      %451 = sbr.rel (0) target = $region49
    $region48: #{global_discriminator_forward.1} parent=1 // pred_region
      %453 = vsyncadd [#allocation5], 0
      %s455 = sshll.u32 [#allocation8], 4
      %s456 = int_to_ptr.vmem [resolvable:$true] %s455
      %s457 = sshll.u32 %s9, 4
      %s458 = int_to_ptr.hbm [resolvable:$true] %s457
      %460 = dma.vmem_to_hbm [thread:$0]  %s456, 16, %s458, [#allocation5]
    $region49: #{global_discriminator_forward.1} parent=1 // pred_fallthru
      _
    // Predicated region
    $region50: #{global_discriminator_forward.1} parent=1 // pred_check
      _
    $region51: #{global_discriminator_forward.1} parent=1 // pred_check_branch
      %462 = sbr.rel (0) target = $region53
    $region52: #{global_discriminator_forward.1} parent=1 // pred_region
      %464 = dma.done [#allocation5], 16
    $region53: #{global_discriminator_forward.1} parent=1 // pred_fallthru
      _
    %465 = vsyncpa [#allocation4], 1
    %466 = vsyncpa [#allocation7], 1
    %467 = vsyncpa [#allocation5], 1

</llo_original>
